<compile_context>
chip_gen: v7x
topology: tpu7x:2x2x1
jax: 0.10.0
libtpu: 0.0.40
codegen_flags: <defaults>
</compile_context>

<pallas_src>
import jax
import jax.numpy as jnp
from jax.experimental import pallas as pl
from jax.experimental.pallas import tpu as pltpu


def _round_up(a: int, b: int) -> int:
    return (a + b - 1) // b * b


def _encode_kernel(x_ref, d_ref, w_ref, o_ref):
    """One batch block.

    x_ref: (bb, natom*3)       flattened coordinates, batch on sublanes
    d_ref: (natom*3, natom*3)  exact root-subtraction operator (I - E)^T
    w_ref: (natom*3, vdim*3)   kron(W_eff, I3)^T, pre-composed over all layers
    o_ref: (bb, vdim*3)
    """
    # delta[b, n*3+c] = x[b, n*3+c] - x[b, 3+c]  (exact: one +x, one -x, rest 0)
    delta = jnp.dot(x_ref[...], d_ref[...], preferred_element_type=jnp.float32)
    o_ref[...] = jnp.dot(
        delta, w_ref[...], preferred_element_type=jnp.float32
    ).astype(o_ref.dtype)


def single_residue_encode(x, weights, *, block_batch: int = 4096):
    """x: (batch, natom, 3), weights: list of (cout, cin) arrays (bias-free).

    Returns (batch, vdim, 3), matching the PyTorch module's forward.
    """
    batch, natom, three = x.shape
    assert three == 3
    natom3 = natom * 3

    # --- Pre-compose the linear chain (all layers are bias-free). ---
    w_eff = weights[0]
    for w in weights[1:]:
        w_eff = w @ w_eff                              # (vdim, natom)
    vdim = w_eff.shape[0]
    vdim3 = vdim * 3

    # Block-diagonal weight so the 3-vector axis rides along the lane axis:
    #   out[b, v*3+c] = sum_n W_eff[v, n] * delta[b, n*3+c]
    w3t = jnp.kron(w_eff, jnp.eye(3, dtype=w_eff.dtype)).T      # (natom3, vdim3)

    # Exact root-subtraction operator (keeps translation invariance; the
    # subtraction happens before the weight matmul, not folded into W).
    idx = jnp.arange(natom3)
    pick_root = jnp.zeros((natom3, natom3), w_eff.dtype).at[idx, 3 + idx % 3].set(1.0)
    d_t = (jnp.eye(natom3, dtype=w_eff.dtype) - pick_root).T    # (natom3, natom3)

    # --- Layout: only trailing-dim reshape (no transpose / lane padding). ---
    x_flat = x.reshape(batch, natom3)

    # Batch-axis tiling: single full-dim block for small batch, large
    # multiple-of-8 blocks (>=2 grid steps, megacore-friendly) for big batch.
    if batch > block_batch:
        bb = max(8, (block_batch // 8) * 8)
        batch_p = _round_up(batch, bb)
        if batch_p != batch:
            x_flat = jnp.pad(x_flat, ((0, batch_p - batch), (0, 0)))
    else:
        bb = batch
        batch_p = batch

    grid = (batch_p // bb,)
    y = pl.pallas_call(
        _encode_kernel,
        out_shape=jax.ShapeDtypeStruct((batch_p, vdim3), x.dtype),
        grid_spec=pltpu.PrefetchScalarGridSpec(
            num_scalar_prefetch=0,
            grid=grid,
            in_specs=[
                pl.BlockSpec((bb, natom3), lambda i: (i, 0)),
                pl.BlockSpec((natom3, natom3), lambda i: (0, 0)),   # resident
                pl.BlockSpec((natom3, vdim3), lambda i: (0, 0)),    # resident
            ],
            out_specs=pl.BlockSpec((bb, vdim3), lambda i: (i, 0)),
        ),
        compiler_params=pltpu.CompilerParams(
            dimension_semantics=("parallel",),
        ),
    )(x_flat, d_t, w3t)

    if batch_p != batch:
        y = y[:batch]
    return y.reshape(batch, vdim, 3)


def init_weights(key, natom, vdim, nlin=1):
    """Deterministic synthetic parameters (VecLinear = Linear without bias)."""
    dims = [(vdim, natom)] + [(vdim, vdim) for _ in range(nlin - 1)]
    keys = jax.random.split(key, len(dims))
    weights = []
    for k, (cout, cin) in zip(keys, dims):
        bound = 1.0 / jnp.sqrt(cin)
        weights.append(
            jax.random.uniform(k, (cout, cin), jnp.float32, -bound, bound)
        )
    return weights


def reference(x, weights):
    """Plain-JAX reference of the PyTorch forward (layers applied sequentially)."""
    root = x[:, 1]
    h = x - root[:, None, :]
    for w in weights:
        h = jnp.einsum("vn,bnc->bvc", w, h)
    return h


if __name__ == "__main__":
    batch, natom, vdim, nlin = 16, 14, 32, 2

    key = jax.random.PRNGKey(0)
    kx, kw = jax.random.split(key)
    # Add a large common offset to exercise translation handling (the root
    # subtraction is done exactly in-kernel, not folded into the weights).
    x = jax.random.normal(kx, (batch, natom, 3), jnp.float32) + 100.0
    weights = init_weights(kw, natom, vdim, nlin)

    out = single_residue_encode(x, weights)
    out = jax.block_until_ready(out)

    ref = reference(x, weights)
    assert out.shape == (batch, vdim, 3), out.shape
    # Pre-composing W_eff reassociates f32 sums -> tiny rounding delta only.
    assert jnp.allclose(out, ref, atol=1e-4, rtol=1e-4), (
        float(jnp.max(jnp.abs(out - ref)))
    )
    print("KERNEL_OK")
</pallas_src>

<mosaic_0001>
module attributes {stable_mosaic.version = 11 : i64} {
  func.func @_encode_kernel(%arg0: i32, %arg1: memref<16x42xf32, #tpu.memory_space<vmem>>, %arg2: memref<42x42xf32, #tpu.memory_space<vmem>>, %arg3: memref<42x96xf32, #tpu.memory_space<vmem>>, %arg4: memref<16x96xf32, #tpu.memory_space<vmem>>) attributes {dimension_semantics = [#tpu.dimension_semantics<parallel>], iteration_bounds = array<i64: 1>, scalar_prefetch = 0 : i64, scratch_operands = 0 : i64, tpu.core_type = #tpu.core_type<tc>, window_params = [{transform_indices = @transform_0, window_bounds = array<i64: 16, 42>}, {pipeline_mode = #tpu.pipeline_mode<synchronous>, transform_indices = @transform_1, window_bounds = array<i64: 42, 42>}, {pipeline_mode = #tpu.pipeline_mode<synchronous>, transform_indices = @transform_2, window_bounds = array<i64: 42, 96>}, {transform_indices = @transform_3, window_bounds = array<i64: 16, 96>}]} {
    %c0 = arith.constant 0 : index
    %c0_0 = arith.constant 0 : index
    %0 = vector.load %arg1[%c0, %c0_0] : memref<16x42xf32, #tpu.memory_space<vmem>>, vector<16x42xf32>
    %c0_1 = arith.constant 0 : index
    %c0_2 = arith.constant 0 : index
    %1 = vector.load %arg2[%c0_1, %c0_2] : memref<42x42xf32, #tpu.memory_space<vmem>>, vector<42x42xf32>
    %cst = arith.constant dense<0.000000e+00> : vector<16x42xf32>
    %2 = tpu.matmul %0, %1, %cst {dimension_numbers = #tpu.dot_dimension_numbers<[1], [0], [0], [1], [0, 0, 1, 1], [], []>} : vector<16x42xf32>, vector<42x42xf32>, vector<16x42xf32> -> vector<16x42xf32>
    %c0_3 = arith.constant 0 : index
    %c0_4 = arith.constant 0 : index
    %3 = vector.load %arg3[%c0_3, %c0_4] : memref<42x96xf32, #tpu.memory_space<vmem>>, vector<42x96xf32>
    %cst_5 = arith.constant dense<0.000000e+00> : vector<16x96xf32>
    %4 = tpu.matmul %2, %3, %cst_5 {dimension_numbers = #tpu.dot_dimension_numbers<[1], [0], [0], [1], [0, 0, 1, 1], [], []>} : vector<16x42xf32>, vector<42x96xf32>, vector<16x96xf32> -> vector<16x96xf32>
    %c0_6 = arith.constant 0 : index
    %c0_7 = arith.constant 0 : index
    %5 = vector.load %arg4[%c0_6, %c0_7] : memref<16x96xf32, #tpu.memory_space<vmem>>, vector<16x96xf32>
    tpu.vector_store %arg4[%c0_6, %c0_7], %4 {strides = array<i32>} : memref<16x96xf32, #tpu.memory_space<vmem>>, vector<16x96xf32>,
    return
  }
  func.func @transform_0(%arg0: i32) -> (i32, i32) {
    %c0_i32 = arith.constant 0 : i32
    %c0_i32_0 = arith.constant 0 : i32
    return %arg0, %c0_i32 : i32, i32
  }
  func.func @transform_1(%arg0: i32) -> (i32, i32) {
    %c0_i32 = arith.constant 0 : i32
    %c0_i32_0 = arith.constant 0 : i32
    %c0_i32_1 = arith.constant 0 : i32
    return %c0_i32, %c0_i32_0 : i32, i32
  }
  func.func @transform_2(%arg0: i32) -> (i32, i32) {
    %c0_i32 = arith.constant 0 : i32
    %c0_i32_0 = arith.constant 0 : i32
    %c0_i32_1 = arith.constant 0 : i32
    return %c0_i32, %c0_i32_0 : i32, i32
  }
  func.func @transform_3(%arg0: i32) -> (i32, i32) {
    %c0_i32 = arith.constant 0 : i32
    %c0_i32_0 = arith.constant 0 : i32
    return %arg0, %c0_i32 : i32, i32
  }
}

</mosaic_0001>

<llo_original>
// kernel: tpu_custom_call.1
$region0: #{tpu_custom_call.1}
  #allocation0 [shape = 'u32[]', space=smem, size = 0x4, offset = 0x4, fixed_abs, tag = 'smem constant byte address 0x4 - core index']
  #allocation1 [shape = 'u32[144,128]{1,0:T(1,128)}', space=vmem, size = 0x12000, scoped, tag = 'internal scratch']
  %s0 = inlined_call_operand.hbm [shape: f32[16,42], index: 0, kind: input, shape index: {}]
  %s1 = inlined_call_operand.hbm [shape: f32[42,42], index: 1, kind: input, shape index: {}]
  %s2 = inlined_call_operand.hbm [shape: f32[42,96], index: 2, kind: input, shape index: {}]
  %s3 = inlined_call_operand.hbm [shape: f32[16,96], index: 3, kind: output, shape index: {}]
  %s4 = sld [smem:[#allocation0]]
  $region34: #{tpu_custom_call.1} parent=0
    _
  %s6 = ssub.s32 1, %s4
  %s7 = scalar_select 0, %s6, %s4
  $region1: #{tpu_custom_call.1} parent=0
    #allocation2 [shape = 'u8[8192]{0}', space=vmem, size = 0x2000, scoped, tag = 'input window, operand 0, single buffered']
    #allocation3 [shape = 's32[1]{0}', space=sflag, size = 0x4, scoped, tag = 'scoped memory for tpu_custom_call.1']
    #allocation4 [shape = 's32[1]{0}', space=sflag, size = 0x4, scoped, tag = 'scoped memory for tpu_custom_call.1']
    #allocation5 [shape = 'u8[24576]{0}', space=vmem, size = 0x6000, scoped, tag = 'input window, operand 1, single buffered']
    #allocation6 [shape = 's32[1]{0}', space=sflag, size = 0x4, scoped, tag = 'scoped memory for tpu_custom_call.1']
    #allocation7 [shape = 'u8[24576]{0}', space=vmem, size = 0x6000, scoped, tag = 'input window, operand 2, single buffered']
    #allocation8 [shape = 'u8[8192]{0}', space=vmem, size = 0x2000, scoped, tag = 'output window, operand 0, single buffered']
    %8 = vsyncpa [#allocation3], 0
    %9 = vsyncpa [#allocation6], 0
    %10 = vsyncpa [#allocation4], 0
    // Predicated region
    $region2: #{tpu_custom_call.1} parent=1 // pred_check
      _
    $region3: #{tpu_custom_call.1} parent=1 // pred_check_branch
      %12 = sbr.rel (0) target = $region5
    $region4: #{tpu_custom_call.1} parent=1 // pred_region
      %s14 = ssub.s32 256, 256
      %15 = vsyncadd [#allocation3], %s14
      %s16 = sshll.u32 [#allocation2], 4
      %s17 = int_to_ptr.vmem [resolvable:$true] %s16
      %22 = dma.hbm_to_vmem [thread:$0]  %s0, 256, %s17, [#allocation3], 128, 128, 8
    $region5: #{tpu_custom_call.1} parent=1 // pred_fallthru
      _
    // Predicated region
    $region6: #{tpu_custom_call.1} parent=1 // pred_check
      _
    $region7: #{tpu_custom_call.1} parent=1 // pred_check_branch
      %24 = sbr.rel (0) target = $region9
    $region8: #{tpu_custom_call.1} parent=1 // pred_region
      %s26 = ssub.s32 768, 768
      %27 = vsyncadd [#allocation6], %s26
      %s28 = sshll.u32 [#allocation5], 4
      %s29 = int_to_ptr.vmem [resolvable:$true] %s28
      %34 = dma.hbm_to_vmem [thread:$0]  %s1, 768, %s29, [#allocation6], 128, 128, 8
    $region9: #{tpu_custom_call.1} parent=1 // pred_fallthru
      _
    // Predicated region
    $region10: #{tpu_custom_call.1} parent=1 // pred_check
      _
    $region11: #{tpu_custom_call.1} parent=1 // pred_check_branch
      %36 = sbr.rel (0) target = $region13
    $region12: #{tpu_custom_call.1} parent=1 // pred_region
      %s38 = ssub.s32 768, 768
      %39 = vsyncadd [#allocation6], %s38
      %s40 = sshll.u32 [#allocation7], 4
      %s41 = int_to_ptr.vmem [resolvable:$true] %s40
      %46 = dma.hbm_to_vmem [thread:$0]  %s2, 768, %s41, [#allocation6], 128, 128, 8
    $region13: #{tpu_custom_call.1} parent=1 // pred_fallthru
      _
    // Predicated region
    $region14: #{tpu_custom_call.1} parent=1 // pred_check
      _
    $region15: #{tpu_custom_call.1} parent=1 // pred_check_branch
      %48 = sbr.rel (0) target = $region17
    $region16: #{tpu_custom_call.1} parent=1 // pred_region
      %49 = dma.done [#allocation3], 256
    $region17: #{tpu_custom_call.1} parent=1 // pred_fallthru
      _
    // Predicated region
    $region18: #{tpu_custom_call.1} parent=1 // pred_check
      _
    $region19: #{tpu_custom_call.1} parent=1 // pred_check_branch
      %51 = sbr.rel (0) target = $region21
    $region20: #{tpu_custom_call.1} parent=1 // pred_region
      %52 = dma.done [#allocation6], 768
    $region21: #{tpu_custom_call.1} parent=1 // pred_fallthru
      _
    // Predicated region
    $region22: #{tpu_custom_call.1} parent=1 // pred_check
      _
    $region23: #{tpu_custom_call.1} parent=1 // pred_check_branch
      %54 = sbr.rel (0) target = $region25
    $region24: #{tpu_custom_call.1} parent=1 // pred_region
      %55 = dma.done [#allocation6], 768
    $region25: #{tpu_custom_call.1} parent=1 // pred_fallthru
      _
    %v56 = vld [vmem:[#allocation2] sm:$0xff]
    %v57 = vld [vmem:[#allocation2 + $0x8] sm:$0xff]
    %v58 = vld [vmem:[#allocation5] sm:$0xff]
    %v59 = vld [vmem:[#allocation5 + $0x8] sm:$0xff]
    %v60 = vld [vmem:[#allocation5 + $0x10] sm:$0xff]
    %v61 = vld [vmem:[#allocation5 + $0x18] sm:$0xff]
    %v62 = vld [vmem:[#allocation5 + $0x20] sm:$0xff]
    %v63 = vld [vmem:[#allocation5 + $0x28] sm:$0x3]
    %vm64 = vcmask 343040
    %v66 = vsel %vm64, %v56, 0
    %v69 = vsel %vm64, %v57, 0
    %vm71 = vcmask 1041408
    %v73 = vsel %vm71, %v63, 0
    %75 = vmatprep.subr.mxu0 0.0
    %76 = vmatpush1.msra.mxu0 %v58
    %77 = vmatprep.subr.mxu0 0.0
    %78 = vmatpush1.msra.mxu0 %v59
    %79 = vmatprep.subr.mxu0 0.0
    %80 = vmatpush1.msra.mxu0 %v60
    %81 = vmatprep.subr.mxu0 0.0
    %82 = vmatpush1.msra.mxu0 %v61
    %83 = vmatprep.subr.mxu0 0.0
    %84 = vmatpush1.msra.mxu0 %v62
    %85 = vmatprep.subr.mxu0 0.0
    %86 = vmatpush1.msra.mxu0 %v73
    %87 = vmatprep.subr.mxu0 0.0
    %88 = vmatpush1.msra.mxu0 0.0
    %89 = vmatprep.subr.mxu0 0.0
    %90 = vmatpush1.msra.mxu0 0.0
    %91 = vmatprep.subr.mxu0 0.0
    %92 = vmatpush1.msra.mxu0 0.0
    %93 = vmatprep.subr.mxu0 0.0
    %94 = vmatpush1.msra.mxu0 0.0
    %95 = vmatprep.subr.mxu0 0.0
    %96 = vmatpush1.msra.mxu0 0.0
    %97 = vmatprep.subr.mxu0 0.0
    %98 = vmatpush1.msra.mxu0 0.0
    %99 = vmatprep.subr.mxu0 0.0
    %100 = vmatpush1.msra.mxu0 0.0
    %101 = vmatprep.subr.mxu0 0.0
    %102 = vmatpush1.msra.mxu0 0.0
    %103 = vmatprep.subr.mxu0 0.0
    %104 = vmatpush1.msra.mxu0 0.0
    %105 = vmatprep.subr.mxu0 0.0
    %106 = vmatpush1.msra.mxu0 0.0
    %107 = vmatprep.subr.mxu0 0.0
    %108 = vmatpush1.msra.mxu0 0.0
    %109 = vmatprep.subr.mxu0 0.0
    %110 = vmatpush1.msra.mxu0 0.0
    %111 = vmatprep.subr.mxu0 0.0
    %112 = vmatpush1.msra.mxu0 0.0
    %113 = vmatprep.subr.mxu0 0.0
    %114 = vmatpush1.msra.mxu0 0.0
    %115 = vmatprep.subr.mxu0 0.0
    %116 = vmatpush1.msra.mxu0 0.0
    %117 = vmatprep.subr.mxu0 0.0
    %118 = vmatpush1.msra.mxu0 0.0
    %119 = vmatprep.subr.mxu0 0.0
    %120 = vmatpush1.msra.mxu0 0.0
    %121 = vmatprep.subr.mxu0 0.0
    %122 = vmatpush1.msra.mxu0 0.0
    %123 = vmatprep.subr.mxu0 0.0
    %124 = vmatpush1.msra.mxu0 0.0
    %125 = vmatprep.subr.mxu0 0.0
    %126 = vmatpush1.msra.mxu0 0.0
    %127 = vmatprep.subr.mxu0 0.0
    %128 = vmatpush1.msra.mxu0 0.0
    %129 = vmatprep.subr.mxu0 0.0
    %130 = vmatpush1.msra.mxu0 0.0
    %131 = vmatprep.subr.mxu0 0.0
    %132 = vmatpush1.msra.mxu0 0.0
    %133 = vmatprep.subr.mxu0 0.0
    %134 = vmatpush1.msra.mxu0 0.0
    %135 = vmatprep.subr.mxu0 0.0
    %136 = vmatpush1.msra.mxu0 0.0
    %137 = vmatprep.subr.mxu0 0.0
    %138 = vmatpush1.msra.mxu0 0.0
    %139 = vmatprep.mubr.f32.mxu0 0.0
    %140 = vmatmul.mubr.f32.gmra.mrb[0].mxu0 %v66
    %v141 = vpop.f32.mrb[0].mxu0
    %v142 = vadd.f32 0.0, %v141
    %v143 = vpop.f32.mrb[0].mxu0
    %144 = vmatprep.mubr.f32.mxu0 0.0
    %145 = vmatmul.mubr.f32.gmra.mrb[0].mxu0 %v69
    %v146 = vpop.f32.mrb[0].mxu0
    %v147 = vadd.f32 0.0, %v146
    %v148 = vpop.f32.mrb[0].mxu0
    %149 = vdwg.mxu0
    %v150 = vld [vmem:[#allocation7] sm:$0xff]
    %v151 = vld [vmem:[#allocation7 + $0x8] sm:$0xff]
    %v152 = vld [vmem:[#allocation7 + $0x10] sm:$0xff]
    %v153 = vld [vmem:[#allocation7 + $0x18] sm:$0xff]
    %v154 = vld [vmem:[#allocation7 + $0x20] sm:$0xff]
    %v155 = vld [vmem:[#allocation7 + $0x28] sm:$0x3]
    %v157 = vsel %vm64, %v142, 0
    %v160 = vsel %vm64, %v147, 0
    %v163 = vsel %vm71, %v155, 0
    %165 = vmatprep.subr.mxu0 0.0
    %166 = vmatpush1.msra.mxu0 %v150
    %167 = vmatprep.subr.mxu0 0.0
    %168 = vmatpush1.msra.mxu0 %v151
    %169 = vmatprep.subr.mxu0 0.0
    %170 = vmatpush1.msra.mxu0 %v152
    %171 = vmatprep.subr.mxu0 0.0
    %172 = vmatpush1.msra.mxu0 %v153
    %173 = vmatprep.subr.mxu0 0.0
    %174 = vmatpush1.msra.mxu0 %v154
    %175 = vmatprep.subr.mxu0 0.0
    %176 = vmatpush1.msra.mxu0 %v163
    %177 = vmatprep.subr.mxu0 0.0
    %178 = vmatpush1.msra.mxu0 0.0
    %179 = vmatprep.subr.mxu0 0.0
    %180 = vmatpush1.msra.mxu0 0.0
    %181 = vmatprep.subr.mxu0 0.0
    %182 = vmatpush1.msra.mxu0 0.0
    %183 = vmatprep.subr.mxu0 0.0
    %184 = vmatpush1.msra.mxu0 0.0
    %185 = vmatprep.subr.mxu0 0.0
    %186 = vmatpush1.msra.mxu0 0.0
    %187 = vmatprep.subr.mxu0 0.0
    %188 = vmatpush1.msra.mxu0 0.0
    %189 = vmatprep.subr.mxu0 0.0
    %190 = vmatpush1.msra.mxu0 0.0
    %191 = vmatprep.subr.mxu0 0.0
    %192 = vmatpush1.msra.mxu0 0.0
    %193 = vmatprep.subr.mxu0 0.0
    %194 = vmatpush1.msra.mxu0 0.0
    %195 = vmatprep.subr.mxu0 0.0
    %196 = vmatpush1.msra.mxu0 0.0
    %197 = vmatprep.subr.mxu0 0.0
    %198 = vmatpush1.msra.mxu0 0.0
    %199 = vmatprep.subr.mxu0 0.0
    %200 = vmatpush1.msra.mxu0 0.0
    %201 = vmatprep.subr.mxu0 0.0
    %202 = vmatpush1.msra.mxu0 0.0
    %203 = vmatprep.subr.mxu0 0.0
    %204 = vmatpush1.msra.mxu0 0.0
    %205 = vmatprep.subr.mxu0 0.0
    %206 = vmatpush1.msra.mxu0 0.0
    %207 = vmatprep.subr.mxu0 0.0
    %208 = vmatpush1.msra.mxu0 0.0
    %209 = vmatprep.subr.mxu0 0.0
    %210 = vmatpush1.msra.mxu0 0.0
    %211 = vmatprep.subr.mxu0 0.0
    %212 = vmatpush1.msra.mxu0 0.0
    %213 = vmatprep.subr.mxu0 0.0
    %214 = vmatpush1.msra.mxu0 0.0
    %215 = vmatprep.subr.mxu0 0.0
    %216 = vmatpush1.msra.mxu0 0.0
    %217 = vmatprep.subr.mxu0 0.0
    %218 = vmatpush1.msra.mxu0 0.0
    %219 = vmatprep.subr.mxu0 0.0
    %220 = vmatpush1.msra.mxu0 0.0
    %221 = vmatprep.subr.mxu0 0.0
    %222 = vmatpush1.msra.mxu0 0.0
    %223 = vmatprep.subr.mxu0 0.0
    %224 = vmatpush1.msra.mxu0 0.0
    %225 = vmatprep.subr.mxu0 0.0
    %226 = vmatpush1.msra.mxu0 0.0
    %227 = vmatprep.subr.mxu0 0.0
    %228 = vmatpush1.msra.mxu0 0.0
    %229 = vmatprep.mubr.f32.mxu0 0.0
    %230 = vmatmul.mubr.f32.gmra.mrb[0].mxu0 %v157
    %v231 = vpop.f32.mrb[0].mxu0
    %v232 = vadd.f32 0.0, %v231
    %v233 = vpop.f32.mrb[0].mxu0
    %234 = vmatprep.mubr.f32.mxu0 0.0
    %235 = vmatmul.mubr.f32.gmra.mrb[0].mxu0 %v160
    %v236 = vpop.f32.mrb[0].mxu0
    %v237 = vadd.f32 0.0, %v236
    %v238 = vpop.f32.mrb[0].mxu0
    %239 = vdwg.mxu0
    %vm240 = vcmask 785408
    %241 = vst.msk [vmem:[#allocation8] sm:$0xff] %vm240, %v232
    %242 = vst.msk [vmem:[#allocation8 + $0x8] sm:$0xff] %vm240, %v237
    // Predicated region
    $region26: #{tpu_custom_call.1} parent=1 // pred_check
      _
    $region27: #{tpu_custom_call.1} parent=1 // pred_check_branch
      %244 = sbr.rel (0) target = $region29
    $region28: #{tpu_custom_call.1} parent=1 // pred_region
      %s246 = ssub.s32 256, 256
      %247 = vsyncadd [#allocation4], %s246
      %s248 = sshll.u32 [#allocation8], 4
      %s249 = int_to_ptr.vmem [resolvable:$true] %s248
      %254 = dma.vmem_to_hbm [thread:$0]  %s249, 256, %s3, [#allocation4], 128, 128, 8
    $region29: #{tpu_custom_call.1} parent=1 // pred_fallthru
      _
    // Predicated region
    $region30: #{tpu_custom_call.1} parent=1 // pred_check
      _
    $region31: #{tpu_custom_call.1} parent=1 // pred_check_branch
      %256 = sbr.rel (0) target = $region33
    $region32: #{tpu_custom_call.1} parent=1 // pred_region
      %257 = dma.done [#allocation4], 256
    $region33: #{tpu_custom_call.1} parent=1 // pred_fallthru
      _
    %258 = vsyncpa [#allocation3], 1
    %259 = vsyncpa [#allocation6], 1
    %260 = vsyncpa [#allocation4], 1

</llo_original>
